<compile_context>
chip_gen: v5e
topology: v5e:2x2
jax: 0.10.0
libtpu: 0.0.40
codegen_flags: <defaults>
</compile_context>

<pallas_src>
import functools

import jax
import jax.numpy as jnp
from jax.experimental import pallas as pl
from jax.experimental.pallas import tpu as pltpu


# ---------------------------------------------------------------------------
# Helpers mirroring the PyTorch reference semantics.
# ---------------------------------------------------------------------------
def _quantize(x, int_bits, frac_bits, signed=True):
    """Mirror of model.quantize (fixed-point round + clamp). No-op if bits are None/0."""
    if int_bits is None or frac_bits is None:
        return x
    if int_bits == 0 and frac_bits == 0:
        return x
    precision = 1.0 / 2 ** frac_bits
    x = jnp.round(x / precision) * precision
    if signed:
        bound = 2.0 ** (int_bits - 1)
        return jnp.clip(x, -bound, bound - precision)
    bound = 2.0 ** int_bits
    return jnp.clip(x, 0.0, bound - precision)


def _activation(x, kind):
    if kind == 'relu':
        return jnp.maximum(x, 0.0)
    if kind == 'tanh':
        return jnp.tanh(x)
    if kind == 'sigmoid':
        return jax.nn.sigmoid(x)
    if kind == 'elu':
        return jnp.where(x > 0, x, jnp.expm1(x))
    return x  # 'none'


def _round_up(a, b):
    return ((a + b - 1) // b) * b


def _exact_in_bf16(int_bits, frac_bits):
    """Fixed-point grid representable exactly in bf16 (<= 8 significand bits)?"""
    if int_bits is None or frac_bits is None:
        return False
    if int_bits == 0 and frac_bits == 0:
        return False
    return (int_bits - 1 + frac_bits) <= 8


def _pick_tile(n_pad, max_tile):
    """Largest multiple of 128 that divides n_pad and is <= max_tile."""
    m = n_pad // 128
    best = 1
    for d in range(1, m + 1):
        if m % d == 0 and d * 128 <= max_tile:
            best = d
    return best * 128


# ---------------------------------------------------------------------------
# Pass 1: lin[i_tile] = quantize(x[i_tile]) @ W_all + b_all     (all heads fused)
# ---------------------------------------------------------------------------
def _lin_kernel(x_ref, w_ref, b_ref, o_ref, *, act_int_bits, act_frac_bits, cast_bf16):
    xq = _quantize(x_ref[...], act_int_bits, act_frac_bits)       # [tm, F_in]
    if cast_bf16:
        # Quantized values fit bf16 exactly -> bf16 MXU path with no semantic change.
        xq = xq.astype(jnp.bfloat16)
    lin = jnp.dot(xq, w_ref[...], preferred_element_type=jnp.float32) + b_ref[...]
    o_ref[...] = lin.astype(o_ref.dtype)                          # [tm, H_pad]


# ---------------------------------------------------------------------------
# Pass 2: out[i_tile] = activation( sum_k adj_hat[i_tile, k_tile] @ lin[k_tile] )
#         Accumulates directly into the resident output block (no scratch).
# ---------------------------------------------------------------------------
def _agg_kernel(adj_ref, lin_ref, o_ref, *, activation, lin_resident):
    k = pl.program_id(1)

    @pl.when(k == 0)
    def _():
        o_ref[...] = jnp.zeros_like(o_ref)

    adj = adj_ref[...]                                            # [tm, tk]
    if lin_resident:
        tk = adj_ref.shape[1]
        start = pl.multiple_of(k * tk, tk)
        lin = lin_ref[pl.ds(start, tk), :]                        # slice resident lin
    else:
        lin = lin_ref[...]                                        # [tk, H_pad]
    if adj.dtype != lin.dtype:
        adj = adj.astype(lin.dtype)                               # only on f32 fallback
    o_ref[...] += jnp.dot(adj, lin, preferred_element_type=jnp.float32)

    if activation != 'none':
        @pl.when(k == pl.num_programs(1) - 1)
        def _():
            o_ref[...] = _activation(o_ref[...], activation)


# ---------------------------------------------------------------------------
# Wrapper: NASLayer.forward (eval mode)
# ---------------------------------------------------------------------------
def nas_layer_forward(x, edge_index, weights, biases, *, activation='relu',
                      concat=True, act_int_bits=None, act_frac_bits=None,
                      weight_int_bits=None, weight_frac_bits=None,
                      max_tile=1024, lin_dtype=jnp.bfloat16,
                      adj_dtype=jnp.bfloat16, vmem_limit_bytes=None):
    """
    x:          [N, F_in] float32
    edge_index: [2, E] int32 (row 0 = source, row 1 = target, PyG convention)
    weights:    [heads, F_out, F_in]   (nn.Linear weight per head)
    biases:     [heads, F_out]
    lin_dtype:  bf16 (fast bf16xbf16 pass-2, ~1e-2 tolerance) or f32 (bit-faithful).
    """
    N, F_in = x.shape
    heads, F_out, _ = weights.shape
    H = heads * F_out
    H_pad = _round_up(H, 128)          # lane-dense outputs / full MXU output columns

    # Head fusion + one-time weight/bias quantization (eval mode), padded to H_pad.
    W_all = _quantize(weights.reshape(H, F_in), weight_int_bits, weight_frac_bits)
    b_all = _quantize(biases.reshape(1, H), weight_int_bits, weight_frac_bits)
    cast_bf16 = (_exact_in_bf16(act_int_bits, act_frac_bits)
                 and _exact_in_bf16(weight_int_bits, weight_frac_bits))
    w_dtype = jnp.bfloat16 if cast_bf16 else jnp.float32
    W_in = jnp.zeros((F_in, H_pad), w_dtype).at[:, :H].set(W_all.T.astype(w_dtype))
    b_in = jnp.zeros((1, H_pad), jnp.float32).at[:, :H].set(b_all.astype(jnp.float32))

    # Node padding to a multiple of 128 only (adj is O(N_pad^2)); tiles divide N_pad.
    max_tile = max(int(max_tile), 128)
    N_pad = _round_up(N, 128)
    tile = _pick_tile(N_pad, max_tile)

    limit = int(vmem_limit_bytes) if vmem_limit_bytes is not None else (16 << 20)
    budget = max(4 << 20, int(limit * 0.85))    # conservative vs v5e 16 MiB scoped default
    lin_bytes = jnp.dtype(lin_dtype).itemsize
    adj_bytes = jnp.dtype(adj_dtype).itemsize

    x_p = x.astype(jnp.float32)
    if N_pad != N:
        x_p = jnp.pad(x_p, ((0, N_pad - N), (0, 0)))

    # Densified adjacency with self-loops (ConstantConv aggr='add'), built directly in
    # its storage dtype. Integer edge counts (+1 self-loop) are exact in bf16 up to 256.
    # Padded rows/cols stay zero so they contribute nothing.
    src, dst = edge_index[0], edge_index[1]
    adj = jnp.zeros((N_pad, N_pad), adj_dtype)
    adj = adj.at[dst, src].add(jnp.ones(src.shape, adj_dtype))
    diag = jnp.arange(N)
    adj = adj.at[diag, diag].add(jnp.ones((N,), adj_dtype))

    # ---- pass 1: per-node linear (all heads fused), computed once, large row tiles ----
    per_row = 2 * (F_in * 4 + H_pad * lin_bytes)              # double-buffered x + lin rows
    pass1_fixed = 2 * F_in * H_pad * jnp.dtype(w_dtype).itemsize + 2 * H_pad * 4
    rows_cap = max(128, ((budget - pass1_fixed) // per_row) // 128 * 128)
    tm1 = _pick_tile(N_pad, min(4096, rows_cap))

    lin_kernel = functools.partial(
        _lin_kernel, act_int_bits=act_int_bits, act_frac_bits=act_frac_bits,
        cast_bf16=cast_bf16)
    cp1 = dict(dimension_semantics=("parallel",))
    if vmem_limit_bytes is not None:
        cp1["vmem_limit_bytes"] = int(vmem_limit_bytes)
    lin = pl.pallas_call(
        lin_kernel,
        out_shape=jax.ShapeDtypeStruct((N_pad, H_pad), lin_dtype),
        grid_spec=pltpu.PrefetchScalarGridSpec(
            num_scalar_prefetch=0,
            grid=(N_pad // tm1,),
            in_specs=[
                pl.BlockSpec((tm1, F_in), lambda i: (i, 0)),    # x row tile
                pl.BlockSpec((F_in, H_pad), lambda i: (0, 0)),  # fused W (resident)
                pl.BlockSpec((1, H_pad), lambda i: (0, 0)),     # fused bias (resident)
            ],
            out_specs=pl.BlockSpec((tm1, H_pad), lambda i: (i, 0)),
        ),
        compiler_params=pltpu.CompilerParams(**cp1),
    )(x_p, W_in, b_in)

    # ---- pass 2: tiled aggregation out = act(adj_hat @ lin) ----
    tm = tk = tile
    fixed2 = 2 * tm * tk * adj_bytes + 2 * tm * H_pad * 4
    lin_resident = (fixed2 + 2 * N_pad * H_pad * lin_bytes) <= budget
    if lin_resident:
        lin_spec = pl.BlockSpec((N_pad, H_pad), lambda i, k: (0, 0))   # fetched once
    else:
        lin_spec = pl.BlockSpec((tk, H_pad), lambda i, k: (k, 0))      # streamed fallback

    kernel_act = activation if concat else 'none'   # concat=False averages first
    agg_kernel = functools.partial(_agg_kernel, activation=kernel_act,
                                   lin_resident=lin_resident)
    cp2 = dict(dimension_semantics=("parallel", "arbitrary"))
    if vmem_limit_bytes is not None:
        cp2["vmem_limit_bytes"] = int(vmem_limit_bytes)
    out = pl.pallas_call(
        agg_kernel,
        out_shape=jax.ShapeDtypeStruct((N_pad, H_pad), jnp.float32),
        grid_spec=pltpu.PrefetchScalarGridSpec(
            num_scalar_prefetch=0,
            grid=(N_pad // tm, N_pad // tk),
            in_specs=[
                pl.BlockSpec((tm, tk), lambda i, k: (i, k)),    # adj tile
                lin_spec,
            ],
            out_specs=pl.BlockSpec((tm, H_pad), lambda i, k: (i, 0)),
        ),
        compiler_params=pltpu.CompilerParams(**cp2),
    )(adj, lin)

    out = out[:N, :H]
    if concat:
        # Columns are head-major: identical to torch.cat(out, dim=1).
        return out
    # concat=False: mean over heads, then activation (matches the PyTorch module).
    return _activation(out.reshape(N, heads, F_out).mean(axis=1), activation)


# ---------------------------------------------------------------------------
# Pure-JAX reference of NASLayer.forward (eval mode) for correctness checking.
# ---------------------------------------------------------------------------
def nas_layer_reference(x, edge_index, weights, biases, *, activation='relu',
                        concat=True, act_int_bits=None, act_frac_bits=None,
                        weight_int_bits=None, weight_frac_bits=None):
    N = x.shape[0]
    heads = weights.shape[0]
    src, dst = edge_index[0], edge_index[1]
    adj = jnp.zeros((N, N), jnp.float32).at[dst, src].add(1.0) + jnp.eye(N)
    xq = _quantize(x, act_int_bits, act_frac_bits)
    outs = []
    for h in range(heads):
        Wq = _quantize(weights[h], weight_int_bits, weight_frac_bits)
        bq = _quantize(biases[h], weight_int_bits, weight_frac_bits)
        outs.append(adj @ (xq @ Wq.T + bq))
    if concat:
        return _activation(jnp.concatenate(outs, axis=1), activation)
    return _activation(sum(outs) / heads, activation)


if __name__ == "__main__":
    import numpy as np

    key = jax.random.PRNGKey(0)
    kx, kw, kb, kx2, kw2, kb2 = jax.random.split(key, 6)

    # ---- test 1: tiny config (single tile, quantized, concat=True) ----
    N, F_in, F_out, heads = 8, 32, 16, 2
    x = jax.random.normal(kx, (N, F_in), dtype=jnp.float32)
    idx = jnp.arange(N, dtype=jnp.int32)
    src = jnp.concatenate([idx, (idx + 1) % N])
    dst = jnp.concatenate([(idx + 1) % N, idx])
    edge_index = jnp.stack([src, dst])
    bound = 1.0 / (F_in ** 0.5)
    W = jax.random.uniform(kw, (heads, F_out, F_in), jnp.float32, -bound, bound)
    b = jax.random.uniform(kb, (heads, F_out), jnp.float32, -bound, bound)

    qkw = dict(act_int_bits=4, act_frac_bits=4, weight_int_bits=2, weight_frac_bits=6)
    ref = nas_layer_reference(x, edge_index, W, b, activation='relu', concat=True, **qkw)

    # Default fast path (bf16 lin, bf16 x bf16 pass-2) -> relaxed tolerance.
    out = nas_layer_forward(x, edge_index, W, b, activation='relu', concat=True, **qkw)
    jax.block_until_ready(out)
    assert out.shape == (N, heads * F_out)
    np.testing.assert_allclose(np.asarray(out), np.asarray(ref), rtol=2e-2, atol=2e-2)

    # f32-lin path stays bit-faithful to the f32 reference.
    out_exact = nas_layer_forward(x, edge_index, W, b, activation='relu', concat=True,
                                  lin_dtype=jnp.float32, **qkw)
    jax.block_until_ready(out_exact)
    np.testing.assert_allclose(np.asarray(out_exact), np.asarray(ref),
                               rtol=1e-5, atol=1e-5)

    # ---- test 2: multi-tile path (N=200 -> N_pad=256, 128x128 tiles, grid (2,2)),
    #              no quantization, concat=False (head average before activation) ----
    N2 = 200
    x2 = jax.random.normal(kx2, (N2, F_in), dtype=jnp.float32)
    idx2 = jnp.arange(N2, dtype=jnp.int32)
    src2 = jnp.concatenate([idx2, (idx2 + 1) % N2])
    dst2 = jnp.concatenate([(idx2 + 1) % N2, idx2])
    ei2 = jnp.stack([src2, dst2])
    W2 = jax.random.uniform(kw2, (heads, F_out, F_in), jnp.float32, -bound, bound)
    b2 = jax.random.uniform(kb2, (heads, F_out), jnp.float32, -bound, bound)

    out2 = nas_layer_forward(x2, ei2, W2, b2, activation='relu', concat=False,
                             max_tile=128)
    jax.block_until_ready(out2)
    assert out2.shape == (N2, F_out)
    ref2 = nas_layer_reference(x2, ei2, W2, b2, activation='relu', concat=False)
    np.testing.assert_allclose(np.asarray(out2), np.asarray(ref2), rtol=2e-2, atol=2e-2)

    print("KERNEL_OK")
</pallas_src>

<mosaic_0001>
module attributes {stable_mosaic.version = 11 : i64} {
  func.func @_lin_kernel(%arg0: i32, %arg1: memref<128x32xf32, #tpu.memory_space<vmem>>, %arg2: memref<32x128xbf16, #tpu.memory_space<vmem>>, %arg3: memref<1x128xf32, #tpu.memory_space<vmem>>, %arg4: memref<128x128xbf16, #tpu.memory_space<vmem>>) attributes {dimension_semantics = [#tpu.dimension_semantics<parallel>], iteration_bounds = array<i64: 1>, scalar_prefetch = 0 : i64, scratch_operands = 0 : i64, tpu.core_type = #tpu.core_type<tc>, window_params = [{transform_indices = @transform_0, window_bounds = array<i64: 128, 32>}, {pipeline_mode = #tpu.pipeline_mode<synchronous>, transform_indices = @transform_1, window_bounds = array<i64: 32, 128>}, {pipeline_mode = #tpu.pipeline_mode<synchronous>, transform_indices = @transform_2, window_bounds = array<i64: 1, 128>}, {transform_indices = @transform_3, window_bounds = array<i64: 128, 128>}]} {
    %c0 = arith.constant 0 : index
    %c0_0 = arith.constant 0 : index
    %0 = vector.load %arg1[%c0, %c0_0] : memref<128x32xf32, #tpu.memory_space<vmem>>, vector<128x32xf32>
    %cst = arith.constant 6.250000e-02 : f32
    %1 = vector.broadcast %cst : f32 to vector<128x32xf32>
    %2 = arith.divf %0, %1 : vector<128x32xf32>
    %3 = math.roundeven %2 : vector<128x32xf32>
    %cst_1 = arith.constant 6.250000e-02 : f32
    %4 = vector.broadcast %cst_1 : f32 to vector<128x32xf32>
    %5 = arith.mulf %3, %4 : vector<128x32xf32>
    %cst_2 = arith.constant -8.000000e+00 : f32
    %cst_3 = arith.constant 7.937500e+00 : f32
    %6 = vector.broadcast %cst_2 : f32 to vector<128x32xf32>
    %7 = arith.maximumf %6, %5 : vector<128x32xf32>
    %8 = vector.broadcast %cst_3 : f32 to vector<128x32xf32>
    %9 = arith.minimumf %8, %7 : vector<128x32xf32>
    %10 = arith.truncf %9 : vector<128x32xf32> to vector<128x32xbf16>
    %c0_4 = arith.constant 0 : index
    %c0_5 = arith.constant 0 : index
    %11 = vector.load %arg2[%c0_4, %c0_5] : memref<32x128xbf16, #tpu.memory_space<vmem>>, vector<32x128xbf16>
    %cst_6 = arith.constant dense<0.000000e+00> : vector<128x128xf32>
    %12 = tpu.matmul %10, %11, %cst_6 {dimension_numbers = #tpu.dot_dimension_numbers<[1], [0], [0], [1], [0, 0, 1, 1], [], []>} : vector<128x32xbf16>, vector<32x128xbf16>, vector<128x128xf32> -> vector<128x128xf32>
    %c0_7 = arith.constant 0 : index
    %c0_8 = arith.constant 0 : index
    %13 = vector.load %arg3[%c0_7, %c0_8] : memref<1x128xf32, #tpu.memory_space<vmem>>, vector<1x128xf32>
    %14 = vector.broadcast %13 : vector<1x128xf32> to vector<128x128xf32>
    %15 = arith.addf %12, %14 : vector<128x128xf32>
    %16 = arith.truncf %15 : vector<128x128xf32> to vector<128x128xbf16>
    %c0_9 = arith.constant 0 : index
    %c0_10 = arith.constant 0 : index
    %17 = vector.load %arg4[%c0_9, %c0_10] : memref<128x128xbf16, #tpu.memory_space<vmem>>, vector<128x128xbf16>
    tpu.vector_store %arg4[%c0_9, %c0_10], %16 {strides = array<i32>} : memref<128x128xbf16, #tpu.memory_space<vmem>>, vector<128x128xbf16>,
    return
  }
  func.func @transform_0(%arg0: i32) -> (i32, i32) {
    %c0_i32 = arith.constant 0 : i32
    %c0_i32_0 = arith.constant 0 : i32
    return %arg0, %c0_i32 : i32, i32
  }
  func.func @transform_1(%arg0: i32) -> (i32, i32) {
    %c0_i32 = arith.constant 0 : i32
    %c0_i32_0 = arith.constant 0 : i32
    %c0_i32_1 = arith.constant 0 : i32
    return %c0_i32, %c0_i32_0 : i32, i32
  }
  func.func @transform_2(%arg0: i32) -> (i32, i32) {
    %c0_i32 = arith.constant 0 : i32
    %c0_i32_0 = arith.constant 0 : i32
    %c0_i32_1 = arith.constant 0 : i32
    return %c0_i32, %c0_i32_0 : i32, i32
  }
  func.func @transform_3(%arg0: i32) -> (i32, i32) {
    %c0_i32 = arith.constant 0 : i32
    %c0_i32_0 = arith.constant 0 : i32
    return %arg0, %c0_i32 : i32, i32
  }
}

</mosaic_0001>

<llo_original>
// kernel: tpu_custom_call.1
$region0: #{tpu_custom_call.1}
  #allocation0 [shape = 'u32[]', space=smem, size = 0x4, offset = 0x4, fixed_abs, tag = 'smem constant byte address 0x4 - core index']
  #allocation1 [shape = 'u32[72,128]{1,0:T(1,128)}', space=vmem, size = 0x9000, scoped, tag = 'internal scratch']
  %s0 = inlined_call_operand.vmem [shape: f32[128,32], index: 0, kind: input, shape index: {}]
  %s1 = inlined_call_operand.vmem [shape: bf16[32,128], index: 1, kind: input, shape index: {}]
  %s2 = inlined_call_operand.vmem [shape: f32[1,128], index: 2, kind: input, shape index: {}]
  %s3 = inlined_call_operand.hbm [shape: bf16[128,128], index: 3, kind: output, shape index: {}]
  %s4 = sld [smem:[#allocation0]]
  $region22: #{tpu_custom_call.1} parent=0
    _
  %s6 = ssub.s32 1, %s4
  %s7 = scalar_select 0, %s6, %s4
  $region1: #{tpu_custom_call.1} parent=0
    #allocation2 [shape = 'u8[32768]{0}', space=vmem, size = 0x8000, scoped, tag = 'output window, operand 0, single buffered']
    #allocation3 [shape = 's32[1]{0}', space=sflag, size = 0x4, scoped, tag = 'scoped memory for tpu_custom_call.1']
    %8 = vsyncpa [#allocation3], 0
    // Predicated region
    $region2: #{tpu_custom_call.1} parent=1 // pred_check
      _
    $region3: #{tpu_custom_call.1} parent=1 // pred_check_branch
      %10 = sbr.rel (0) target = $region5
    $region4: #{tpu_custom_call.1} parent=1 // pred_region
      _
    $region5: #{tpu_custom_call.1} parent=1 // pred_fallthru
      _
    // Predicated region
    $region6: #{tpu_custom_call.1} parent=1 // pred_check
      _
    $region7: #{tpu_custom_call.1} parent=1 // pred_check_branch
      %12 = sbr.rel (0) target = $region9
    $region8: #{tpu_custom_call.1} parent=1 // pred_region
      _
    $region9: #{tpu_custom_call.1} parent=1 // pred_fallthru
      _
    // Predicated region
    $region10: #{tpu_custom_call.1} parent=1 // pred_check
      _
    $region11: #{tpu_custom_call.1} parent=1 // pred_check_branch
      %14 = sbr.rel (0) target = $region13
    $region12: #{tpu_custom_call.1} parent=1 // pred_region
      _
    $region13: #{tpu_custom_call.1} parent=1 // pred_fallthru
      _
    %v16 = vld [vmem:[%s0] sm:$0xff]
    %v17 = vld [vmem:[%s0 + $0x8] sm:$0xff]
    %v18 = vld [vmem:[%s0 + $0x10] sm:$0xff]
    %v19 = vld [vmem:[%s0 + $0x18] sm:$0xff]
    %v20 = vld [vmem:[%s0 + $0x20] sm:$0xff]
    %v21 = vld [vmem:[%s0 + $0x28] sm:$0xff]
    %v22 = vld [vmem:[%s0 + $0x30] sm:$0xff]
    %v23 = vld [vmem:[%s0 + $0x38] sm:$0xff]
    %v24 = vld [vmem:[%s0 + $0x40] sm:$0xff]
    %v25 = vld [vmem:[%s0 + $0x48] sm:$0xff]
    %v26 = vld [vmem:[%s0 + $0x50] sm:$0xff]
    %v27 = vld [vmem:[%s0 + $0x58] sm:$0xff]
    %v28 = vld [vmem:[%s0 + $0x60] sm:$0xff]
    %v29 = vld [vmem:[%s0 + $0x68] sm:$0xff]
    %v30 = vld [vmem:[%s0 + $0x70] sm:$0xff]
    %v31 = vld [vmem:[%s0 + $0x78] sm:$0xff]
    %v32 = vrcp.pop 0.0625
    %v33 = vmul.f32 0.0625, %v32
    %v34 = vsub.f32 1.0, %v33
    %v35 = vmul.f32 %v32, %v34
    %v36 = vadd.f32 %v32, %v35
    %vm37 = vweird.f32 %v32
    %v38 = vsel %vm37, %v32, %v36
    %v39 = vmul.f32 %v16, %v38
    %v40 = vmul.f32 %v17, %v38
    %v41 = vmul.f32 %v18, %v38
    %v42 = vmul.f32 %v19, %v38
    %v43 = vmul.f32 %v20, %v38
    %v44 = vmul.f32 %v21, %v38
    %v45 = vmul.f32 %v22, %v38
    %v46 = vmul.f32 %v23, %v38
    %v47 = vmul.f32 %v24, %v38
    %v48 = vmul.f32 %v25, %v38
    %v49 = vmul.f32 %v26, %v38
    %v50 = vmul.f32 %v27, %v38
    %v51 = vmul.f32 %v28, %v38
    %v52 = vmul.f32 %v29, %v38
    %v53 = vmul.f32 %v30, %v38
    %v54 = vmul.f32 %v31, %v38
    %v55 = vround.ne.pseudo %v39
    %v56 = vround.ne.pseudo %v40
    %v57 = vround.ne.pseudo %v41
    %v58 = vround.ne.pseudo %v42
    %v59 = vround.ne.pseudo %v43
    %v60 = vround.ne.pseudo %v44
    %v61 = vround.ne.pseudo %v45
    %v62 = vround.ne.pseudo %v46
    %v63 = vround.ne.pseudo %v47
    %v64 = vround.ne.pseudo %v48
    %v65 = vround.ne.pseudo %v49
    %v66 = vround.ne.pseudo %v50
    %v67 = vround.ne.pseudo %v51
    %v68 = vround.ne.pseudo %v52
    %v69 = vround.ne.pseudo %v53
    %v70 = vround.ne.pseudo %v54
    %v71 = vmul.f32 %v55, 0.0625
    %v72 = vmul.f32 %v56, 0.0625
    %v73 = vmul.f32 %v57, 0.0625
    %v74 = vmul.f32 %v58, 0.0625
    %v75 = vmul.f32 %v59, 0.0625
    %v76 = vmul.f32 %v60, 0.0625
    %v77 = vmul.f32 %v61, 0.0625
    %v78 = vmul.f32 %v62, 0.0625
    %v79 = vmul.f32 %v63, 0.0625
    %v80 = vmul.f32 %v64, 0.0625
    %v81 = vmul.f32 %v65, 0.0625
    %v82 = vmul.f32 %v66, 0.0625
    %v83 = vmul.f32 %v67, 0.0625
    %v84 = vmul.f32 %v68, 0.0625
    %v85 = vmul.f32 %v69, 0.0625
    %v86 = vmul.f32 %v70, 0.0625
    %v87 = vmax.f32 %v71, -8.0
    %v88 = vmax.f32 %v72, -8.0
    %v89 = vmax.f32 %v73, -8.0
    %v90 = vmax.f32 %v74, -8.0
    %v91 = vmax.f32 %v75, -8.0
    %v92 = vmax.f32 %v76, -8.0
    %v93 = vmax.f32 %v77, -8.0
    %v94 = vmax.f32 %v78, -8.0
    %v95 = vmax.f32 %v79, -8.0
    %v96 = vmax.f32 %v80, -8.0
    %v97 = vmax.f32 %v81, -8.0
    %v98 = vmax.f32 %v82, -8.0
    %v99 = vmax.f32 %v83, -8.0
    %v100 = vmax.f32 %v84, -8.0
    %v101 = vmax.f32 %v85, -8.0
    %v102 = vmax.f32 %v86, -8.0
    %v103 = vmin.f32 %v87, 7.9375
    %v104 = vmin.f32 %v88, 7.9375
    %v105 = vmin.f32 %v89, 7.9375
    %v106 = vmin.f32 %v90, 7.9375
    %v107 = vmin.f32 %v91, 7.9375
    %v108 = vmin.f32 %v92, 7.9375
    %v109 = vmin.f32 %v93, 7.9375
    %v110 = vmin.f32 %v94, 7.9375
    %v111 = vmin.f32 %v95, 7.9375
    %v112 = vmin.f32 %v96, 7.9375
    %v113 = vmin.f32 %v97, 7.9375
    %v114 = vmin.f32 %v98, 7.9375
    %v115 = vmin.f32 %v99, 7.9375
    %v116 = vmin.f32 %v100, 7.9375
    %v117 = vmin.f32 %v101, 7.9375
    %v118 = vmin.f32 %v102, 7.9375
    %v119 = vpack.c.bf16 %v104, %v103
    %v120 = vpack.c.bf16 %v106, %v105
    %v121 = vpack.c.bf16 %v108, %v107
    %v122 = vpack.c.bf16 %v110, %v109
    %v123 = vpack.c.bf16 %v112, %v111
    %v124 = vpack.c.bf16 %v114, %v113
    %v125 = vpack.c.bf16 %v116, %v115
    %v126 = vpack.c.bf16 %v118, %v117
    %v127 = vld [vmem:[%s1] sm:$0xf]
    %v128 = vld [vmem:[%s1 + $0x4] sm:$0xf]
    %v129 = vld [vmem:[%s1 + $0x8] sm:$0xf]
    %v130 = vld [vmem:[%s1 + $0xc] sm:$0xf]
    %v131 = vld [vmem:[%s2] sm:$0x1]
    %v133 = vperm.slane %v131, 0
    %v139 = vunpack.c.l.b16 %v127
    %v140 = vunpack.c.l.b16 %v128
    %v141 = vunpack.c.l.b16 %v129
    %v142 = vunpack.c.l.b16 %v130
    %v143 = vpack.c.b16 %v140, %v139
    %v144 = vpack.c.b16 %v142, %v141
    %vm147 = vcmask 261120
    %v149 = vsel %vm147, %v119, 0
    %v152 = vsel %vm147, %v120, 0
    %v155 = vsel %vm147, %v121, 0
    %v158 = vsel %vm147, %v122, 0
    %v161 = vsel %vm147, %v123, 0
    %v164 = vsel %vm147, %v124, 0
    %v167 = vsel %vm147, %v125, 0
    %v170 = vsel %vm147, %v126, 0
    %172 = vmatpush.bf16.msra.mxu0 0
    %173 = vmatpush.bf16.msra.mxu0 0
    %174 = vmatpush.bf16.msra.mxu0 0
    %175 = vmatpush.bf16.msra.mxu0 0
    %176 = vmatpush.bf16.msra.mxu0 0
    %177 = vmatpush.bf16.msra.mxu0 0
    %178 = vmatpush.bf16.msra.mxu0 %v144
    %179 = vmatpush.bf16.msra.mxu0 %v143
    %180 = vmatmul.bf16.gmra.mxu0 %v149
    %v181 = vpop.f32.mrf.mxu0
    %v182 = vadd.f32 %v133, %v181
    %v183 = vpop.f32.mrf.mxu0
    %v184 = vadd.f32 %v133, %v183
    %185 = vmatmul.bf16.gmra.mxu0 %v152
    %v186 = vpop.f32.mrf.mxu0
    %v187 = vadd.f32 %v133, %v186
    %v188 = vpop.f32.mrf.mxu0
    %v189 = vadd.f32 %v133, %v188
    %190 = vmatmul.bf16.gmra.mxu0 %v155
    %v191 = vpop.f32.mrf.mxu0
    %v192 = vadd.f32 %v133, %v191
    %v193 = vpop.f32.mrf.mxu0
    %v194 = vadd.f32 %v133, %v193
    %195 = vmatmul.bf16.gmra.mxu0 %v158
    %v196 = vpop.f32.mrf.mxu0
    %v197 = vadd.f32 %v133, %v196
    %v198 = vpop.f32.mrf.mxu0
    %v199 = vadd.f32 %v133, %v198
    %200 = vmatmul.bf16.gmra.mxu0 %v161
    %v201 = vpop.f32.mrf.mxu0
    %v202 = vadd.f32 %v133, %v201
    %v203 = vpop.f32.mrf.mxu0
    %v204 = vadd.f32 %v133, %v203
    %205 = vmatmul.bf16.gmra.mxu0 %v164
    %v206 = vpop.f32.mrf.mxu0
    %v207 = vadd.f32 %v133, %v206
    %v208 = vpop.f32.mrf.mxu0
    %v209 = vadd.f32 %v133, %v208
    %210 = vmatmul.bf16.gmra.mxu0 %v167
    %v211 = vpop.f32.mrf.mxu0
    %v212 = vadd.f32 %v133, %v211
    %v213 = vpop.f32.mrf.mxu0
    %v214 = vadd.f32 %v133, %v213
    %215 = vmatmul.bf16.gmra.mxu0 %v170
    %v216 = vpop.f32.mrf.mxu0
    %v217 = vadd.f32 %v133, %v216
    %v218 = vpop.f32.mrf.mxu0
    %v219 = vadd.f32 %v133, %v218
    %220 = vdwg.mxu0
    %v221 = vpack.c.bf16 %v182, %v182
    %v222 = vpack.c.bf16 %v184, %v184
    %v223 = vpack.c.bf16 %v187, %v187
    %v224 = vpack.c.bf16 %v189, %v189
    %v225 = vpack.c.bf16 %v192, %v192
    %v226 = vpack.c.bf16 %v194, %v194
    %v227 = vpack.c.bf16 %v197, %v197
    %v228 = vpack.c.bf16 %v199, %v199
    %v229 = vpack.c.bf16 %v202, %v202
    %v230 = vpack.c.bf16 %v204, %v204
    %v231 = vpack.c.bf16 %v207, %v207
    %v232 = vpack.c.bf16 %v209, %v209
    %v233 = vpack.c.bf16 %v212, %v212
    %v234 = vpack.c.bf16 %v214, %v214
    %v235 = vpack.c.bf16 %v217, %v217
    %v236 = vpack.c.bf16 %v219, %v219
    %237 = vst [vmem:[#allocation2] sm:$0xf] %v221
    %238 = vst [vmem:[#allocation2 + $0x4] sm:$0xf] %v222
    %239 = vst [vmem:[#allocation2 + $0x8] sm:$0xf] %v223
    %240 = vst [vmem:[#allocation2 + $0xc] sm:$0xf] %v224
    %241 = vst [vmem:[#allocation2 + $0x10] sm:$0xf] %v225
    %242 = vst [vmem:[#allocation2 + $0x14] sm:$0xf] %v226
    %243 = vst [vmem:[#allocation2 + $0x18] sm:$0xf] %v227
    %244 = vst [vmem:[#allocation2 + $0x1c] sm:$0xf] %v228
    %245 = vst [vmem:[#allocation2 + $0x20] sm:$0xf] %v229
    %246 = vst [vmem:[#allocation2 + $0x24] sm:$0xf] %v230
    %247 = vst [vmem:[#allocation2 + $0x28] sm:$0xf] %v231
    %248 = vst [vmem:[#allocation2 + $0x2c] sm:$0xf] %v232
    %249 = vst [vmem:[#allocation2 + $0x30] sm:$0xf] %v233
    %250 = vst [vmem:[#allocation2 + $0x34] sm:$0xf] %v234
    %251 = vst [vmem:[#allocation2 + $0x38] sm:$0xf] %v235
    %252 = vst [vmem:[#allocation2 + $0x3c] sm:$0xf] %v236
    // Predicated region
    $region14: #{tpu_custom_call.1} parent=1 // pred_check
      _
    $region15: #{tpu_custom_call.1} parent=1 // pred_check_branch
      %254 = sbr.rel (0) target = $region17
    $region16: #{tpu_custom_call.1} parent=1 // pred_region
      %256 = vsyncadd [#allocation3], 0
      %s257 = sshll.u32 [#allocation2], 4
      %s258 = int_to_ptr.vmem [resolvable:$true] %s257
      %s259 = sshll.u32 %s3, 4
      %s260 = int_to_ptr.hbm [resolvable:$true] %s259
      %265 = dma.vmem_to_hbm [thread:$0]  %s258, 1024, %s260, [#allocation3], 64, 64, 4
    $region17: #{tpu_custom_call.1} parent=1 // pred_fallthru
      _
    // Predicated region
    $region18: #{tpu_custom_call.1} parent=1 // pred_check
      _
    $region19: #{tpu_custom_call.1} parent=1 // pred_check_branch
      %267 = sbr.rel (0) target = $region21
    $region20: #{tpu_custom_call.1} parent=1 // pred_region
      %269 = dma.done [#allocation3], 1024
    $region21: #{tpu_custom_call.1} parent=1 // pred_fallthru
      _
    %270 = vsyncpa [#allocation3], 1

</llo_original>
